<compile_context>
chip_gen: v6e
topology: v6e:2x2x1
jax: 0.10.0
libtpu: 0.0.40
codegen_flags: <defaults>
</compile_context>

<pallas_src>
import functools

import jax
import jax.numpy as jnp
from jax.experimental import pallas as pl
from jax.experimental.pallas import tpu as pltpu

EPS = 1e-5  # PyTorch BatchNorm2d default eps


# ---------------------------------------------------------------------------
# Fused kernel for one HW tile:  o[n] = W^T @ relu(x[n] * scale + shift)
#   x_ref  : (N, Cin, T)   input dtype (bf16 or f32)
#   sb_ref : (Cin, 2)      f32   [:,0] = BN scale, [:,1] = BN shift
#   w_ref  : (Cout, Cin)   bf16  transposed ConvTranspose2d weight
#   o_ref  : (N, Cout, T)  same dtype as input
# ---------------------------------------------------------------------------
def _bn_relu_convt1x1_kernel(x_ref, sb_ref, w_ref, o_ref, *, n_batch):
    s = sb_ref[:, 0:1]                                   # (Cin, 1) f32
    b = sb_ref[:, 1:2]                                   # (Cin, 1) f32
    w = w_ref[...]                                       # (Cout, Cin) bf16

    # BN affine + ReLU in f32 on the VPU (v5e-safe), cast to bf16 for the MXU.
    acts = []
    for n in range(n_batch):                             # static unroll (small N)
        x = x_ref[n].astype(jnp.float32)                 # (Cin, T)
        acts.append(jnp.maximum(x * s + b, 0.0).astype(w.dtype))

    # Fold N into the lane axis -> one dot streaming N*T columns per weight load.
    act = jnp.concatenate(acts, axis=-1) if n_batch > 1 else acts[0]  # (Cin, N*T)
    y = jnp.dot(w, act, preferred_element_type=jnp.float32)           # (Cout, N*T)

    t = x_ref.shape[-1]
    for n in range(n_batch):
        o_ref[n] = y[:, n * t:(n + 1) * t].astype(o_ref.dtype)


def _pick_hw_tile(hw, n, cin, itemsize):
    """Largest lane-dense tile dividing HW with a bounded per-step input block."""
    if hw % 128 != 0:
        return hw  # full-extent block; see TODO above
    budget = 4 * 1024 * 1024  # keep double-buffered blocks well inside v7x VMEM
    tile = hw
    while (tile > 128 and n * cin * tile * itemsize > budget
           and (tile // 2) % 128 == 0):
        tile //= 2
    return tile


# ---------------------------------------------------------------------------
# One-time parameter preparation (hoisted out of the per-call path).
# ---------------------------------------------------------------------------
def prepare_params(params):
    scale = params["bn1_gamma"] / jnp.sqrt(params["bn1_var"] + EPS)
    shift = params["bn1_beta"] - params["bn1_mean"] * scale
    sb = jnp.stack([scale, shift], axis=1).astype(jnp.float32)          # (Cin, 2)
    # ConvTranspose2d weight (Cin, Cout, 1, 1): out[o] = sum_i w[i, o] * act[i]
    w_t = jnp.transpose(params["conv1_w"][:, :, 0, 0], (1, 0)).astype(jnp.bfloat16)
    return {"sb": sb, "w_t": w_t}


def transition_block3_forward(prepared, x_nchw):
    """x_nchw: (N, Cin, H, W) (bf16 or f32) -> (N, Cout, H, W) same dtype."""
    N, Cin, H, W = x_nchw.shape
    HW = H * W
    sb = prepared["sb"]
    w_t = prepared["w_t"]
    Cout = w_t.shape[0]

    x3 = x_nchw.reshape(N, Cin, HW)                      # free NCHW view, no cast
    out_dtype = x_nchw.dtype

    hw_tile = _pick_hw_tile(HW, N, Cin, x3.dtype.itemsize)
    grid = (HW // hw_tile,)                              # (1,) at the toy shape

    kernel = functools.partial(_bn_relu_convt1x1_kernel, n_batch=N)

    out = pl.pallas_call(
        kernel,
        out_shape=jax.ShapeDtypeStruct((N, Cout, HW), out_dtype),
        grid_spec=pltpu.PrefetchScalarGridSpec(
            num_scalar_prefetch=0,
            grid=grid,
            in_specs=[
                pl.BlockSpec((N, Cin, hw_tile), lambda t: (0, 0, t)),
                pl.BlockSpec((Cin, 2), lambda t: (0, 0)),
                pl.BlockSpec((Cout, Cin), lambda t: (0, 0)),
            ],
            out_specs=pl.BlockSpec((N, Cout, hw_tile), lambda t: (0, 0, t)),
        ),
        compiler_params=pltpu.CompilerParams(
            dimension_semantics=("parallel",)),          # HW tiles -> both v7x TCs
    )(x3, sb, w_t)

    return out.reshape(N, Cout, H, W)


# ---------------------------------------------------------------------------
# Deterministic synthetic parameters (PyTorch shapes / fresh-init BN stats).
# ---------------------------------------------------------------------------
def init_params(key, in_planes, out_planes):
    k_gamma, k_beta, k_w = jax.random.split(key, 3)
    return {
        "bn1_gamma": jax.random.uniform(k_gamma, (in_planes,),
                                        minval=0.5, maxval=1.5).astype(jnp.float32),
        "bn1_beta": (0.1 * jax.random.normal(k_beta, (in_planes,))).astype(jnp.float32),
        "bn1_mean": jnp.zeros((in_planes,), jnp.float32),   # running_mean at init
        "bn1_var": jnp.ones((in_planes,), jnp.float32),     # running_var at init
        # ConvTranspose2d(in_planes, out_planes, 1, bias=False): (Cin, Cout, 1, 1)
        "conv1_w": (0.1 * jax.random.normal(k_w, (in_planes, out_planes, 1, 1))
                    ).astype(jnp.float32),
    }


if __name__ == "__main__":
    key = jax.random.PRNGKey(0)
    pkey, xkey = jax.random.split(key)

    N, Cin, Cout, H, W = 2, 32, 16, 16, 16
    params = init_params(pkey, Cin, Cout)
    prepared = prepare_params(params)                    # hoisted, once

    # Producer hands over bf16 activations (no wrapper-side astype).
    x = jax.random.normal(xkey, (N, Cin, H, W), dtype=jnp.bfloat16)

    fwd = jax.jit(transition_block3_forward)
    out = fwd(prepared, x)
    jax.block_until_ready(out)

    assert out.shape == (N, Cout, H, W) and out.dtype == x.dtype

    # Tolerant reference check (bf16 activation/output rounding expected).
    xf = x.astype(jnp.float32).reshape(N, Cin, H * W)
    s = prepared["sb"][:, 0:1]
    b = prepared["sb"][:, 1:2]
    act = jnp.maximum(xf * s + b, 0.0)
    ref = jnp.einsum("oc,ncs->nos", prepared["w_t"].astype(jnp.float32), act)
    ref = ref.reshape(N, Cout, H, W)
    assert jnp.allclose(out.astype(jnp.float32), ref, atol=5e-2, rtol=5e-2)

    print("KERNEL_OK")
</pallas_src>

<mosaic_0001>
module attributes {stable_mosaic.version = 11 : i64} {
  func.func @_bn_relu_convt1x1_kernel(%arg0: i32, %arg1: memref<2x32x256xbf16, #tpu.memory_space<vmem>>, %arg2: memref<32x2xf32, #tpu.memory_space<vmem>>, %arg3: memref<16x32xbf16, #tpu.memory_space<vmem>>, %arg4: memref<2x16x256xbf16, #tpu.memory_space<vmem>>) attributes {dimension_semantics = [#tpu.dimension_semantics<parallel>], iteration_bounds = array<i64: 1>, scalar_prefetch = 0 : i64, scratch_operands = 0 : i64, tpu.core_type = #tpu.core_type<tc>, window_params = [{transform_indices = @transform_0, window_bounds = array<i64: 2, 32, 256>}, {pipeline_mode = #tpu.pipeline_mode<synchronous>, transform_indices = @transform_1, window_bounds = array<i64: 32, 2>}, {pipeline_mode = #tpu.pipeline_mode<synchronous>, transform_indices = @transform_2, window_bounds = array<i64: 16, 32>}, {transform_indices = @transform_3, window_bounds = array<i64: 2, 16, 256>}]} {
    %c0 = arith.constant 0 : index
    %c0_0 = arith.constant 0 : index
    %0 = vector.load %arg2[%c0, %c0_0] : memref<32x2xf32, #tpu.memory_space<vmem>>, vector<32x1xf32>
    %c0_1 = arith.constant 0 : index
    %c1 = arith.constant 1 : index
    %1 = vector.load %arg2[%c0_1, %c1] : memref<32x2xf32, #tpu.memory_space<vmem>>, vector<32x1xf32>
    %c0_2 = arith.constant 0 : index
    %c0_3 = arith.constant 0 : index
    %2 = vector.load %arg3[%c0_2, %c0_3] : memref<16x32xbf16, #tpu.memory_space<vmem>>, vector<16x32xbf16>
    %c0_4 = arith.constant 0 : index
    %c0_5 = arith.constant 0 : index
    %c0_6 = arith.constant 0 : index
    %3 = vector.load %arg1[%c0_4, %c0_5, %c0_6] : memref<2x32x256xbf16, #tpu.memory_space<vmem>>, vector<1x32x256xbf16>
    %4 = vector.shape_cast %3 : vector<1x32x256xbf16> to vector<32x256xbf16>
    %5 = arith.extf %4 : vector<32x256xbf16> to vector<32x256xf32>
    %6 = vector.broadcast %0 : vector<32x1xf32> to vector<32x256xf32>
    %7 = arith.mulf %5, %6 : vector<32x256xf32>
    %8 = vector.broadcast %1 : vector<32x1xf32> to vector<32x256xf32>
    %9 = arith.addf %7, %8 : vector<32x256xf32>
    %cst = arith.constant 0.000000e+00 : f32
    %10 = vector.broadcast %cst : f32 to vector<32x256xf32>
    %11 = arith.maximumf %9, %10 : vector<32x256xf32>
    %12 = arith.truncf %11 : vector<32x256xf32> to vector<32x256xbf16>
    %c1_7 = arith.constant 1 : index
    %c0_8 = arith.constant 0 : index
    %c0_9 = arith.constant 0 : index
    %13 = vector.load %arg1[%c1_7, %c0_8, %c0_9] : memref<2x32x256xbf16, #tpu.memory_space<vmem>>, vector<1x32x256xbf16>
    %14 = vector.shape_cast %13 : vector<1x32x256xbf16> to vector<32x256xbf16>
    %15 = arith.extf %14 : vector<32x256xbf16> to vector<32x256xf32>
    %16 = vector.broadcast %0 : vector<32x1xf32> to vector<32x256xf32>
    %17 = arith.mulf %15, %16 : vector<32x256xf32>
    %18 = vector.broadcast %1 : vector<32x1xf32> to vector<32x256xf32>
    %19 = arith.addf %17, %18 : vector<32x256xf32>
    %cst_10 = arith.constant 0.000000e+00 : f32
    %20 = vector.broadcast %cst_10 : f32 to vector<32x256xf32>
    %21 = arith.maximumf %19, %20 : vector<32x256xf32>
    %22 = arith.truncf %21 : vector<32x256xf32> to vector<32x256xbf16>
    %23 = tpu.concatenate %12, %22 in 1 : vector<32x256xbf16>, vector<32x256xbf16> -> vector<32x512xbf16>
    %cst_11 = arith.constant dense<0.000000e+00> : vector<16x512xf32>
    %24 = tpu.matmul %2, %23, %cst_11 {dimension_numbers = #tpu.dot_dimension_numbers<[1], [0], [0], [1], [0, 0, 1, 1], [], []>} : vector<16x32xbf16>, vector<32x512xbf16>, vector<16x512xf32> -> vector<16x512xf32>
    %25 = vector.extract_strided_slice %24 {offsets = [0, 0], sizes = [16, 256], strides = [1, 1]} : vector<16x512xf32> to vector<16x256xf32>
    %26 = arith.truncf %25 : vector<16x256xf32> to vector<16x256xbf16>
    %c0_12 = arith.constant 0 : index
    %c0_13 = arith.constant 0 : index
    %c0_14 = arith.constant 0 : index
    %27 = vector.load %arg4[%c0_12, %c0_13, %c0_14] : memref<2x16x256xbf16, #tpu.memory_space<vmem>>, vector<1x16x256xbf16>
    %28 = vector.shape_cast %27 : vector<1x16x256xbf16> to vector<16x256xbf16>
    %29 = vector.shape_cast %26 : vector<16x256xbf16> to vector<1x16x256xbf16>
    tpu.vector_store %arg4[%c0_12, %c0_13, %c0_14], %29 {strides = array<i32>} : memref<2x16x256xbf16, #tpu.memory_space<vmem>>, vector<1x16x256xbf16>,
    %30 = vector.extract_strided_slice %24 {offsets = [0, 256], sizes = [16, 256], strides = [1, 1]} : vector<16x512xf32> to vector<16x256xf32>
    %31 = arith.truncf %30 : vector<16x256xf32> to vector<16x256xbf16>
    %c1_15 = arith.constant 1 : index
    %c0_16 = arith.constant 0 : index
    %c0_17 = arith.constant 0 : index
    %32 = vector.load %arg4[%c1_15, %c0_16, %c0_17] : memref<2x16x256xbf16, #tpu.memory_space<vmem>>, vector<1x16x256xbf16>
    %33 = vector.shape_cast %32 : vector<1x16x256xbf16> to vector<16x256xbf16>
    %34 = vector.shape_cast %31 : vector<16x256xbf16> to vector<1x16x256xbf16>
    tpu.vector_store %arg4[%c1_15, %c0_16, %c0_17], %34 {strides = array<i32>} : memref<2x16x256xbf16, #tpu.memory_space<vmem>>, vector<1x16x256xbf16>,
    return
  }
  func.func @transform_0(%arg0: i32) -> (i32, i32, i32) {
    %c0_i32 = arith.constant 0 : i32
    %c0_i32_0 = arith.constant 0 : i32
    %c0_i32_1 = arith.constant 0 : i32
    return %c0_i32, %c0_i32_0, %arg0 : i32, i32, i32
  }
  func.func @transform_1(%arg0: i32) -> (i32, i32) {
    %c0_i32 = arith.constant 0 : i32
    %c0_i32_0 = arith.constant 0 : i32
    %c0_i32_1 = arith.constant 0 : i32
    return %c0_i32, %c0_i32_0 : i32, i32
  }
  func.func @transform_2(%arg0: i32) -> (i32, i32) {
    %c0_i32 = arith.constant 0 : i32
    %c0_i32_0 = arith.constant 0 : i32
    %c0_i32_1 = arith.constant 0 : i32
    return %c0_i32, %c0_i32_0 : i32, i32
  }
  func.func @transform_3(%arg0: i32) -> (i32, i32, i32) {
    %c0_i32 = arith.constant 0 : i32
    %c0_i32_0 = arith.constant 0 : i32
    %c0_i32_1 = arith.constant 0 : i32
    return %c0_i32, %c0_i32_0, %arg0 : i32, i32, i32
  }
}

</mosaic_0001>

<llo_original>
// kernel: transition_block3_forward.1
$region0: #{transition_block3_forward.1}
  #allocation0 [shape = 'u32[]', space=smem, size = 0x4, offset = 0x4, fixed_abs, tag = 'smem constant byte address 0x4 - core index']
  #allocation1 [shape = 'u32[144,128]{1,0:T(1,128)}', space=vmem, size = 0x12000, scoped, tag = 'internal scratch']
  %s0 = inlined_call_operand.vmem [shape: bf16[2,32,256], index: 0, kind: input, shape index: {}]
  %s1 = inlined_call_operand.vmem [shape: f32[32,2], index: 1, kind: input, shape index: {}]
  %s2 = inlined_call_operand.vmem [shape: bf16[16,32], index: 2, kind: input, shape index: {}]
  %s3 = inlined_call_operand.vmem [shape: bf16[2,16,256], index: 3, kind: output, shape index: {}]
  %s4 = sld [smem:[#allocation0]]
  $region22: #{transition_block3_forward.1} parent=0
    _
  %s6 = ssub.s32 1, %s4
  %s7 = scalar_select 0, %s6, %s4
  // Predicated region
  $region2: #{transition_block3_forward.1} parent=0 // pred_check
    _
  $region3: #{transition_block3_forward.1} parent=0 // pred_check_branch
    %9 = sbr.rel (0) target = $region5
  $region4: #{transition_block3_forward.1} parent=0 // pred_region
    _
  $region5: #{transition_block3_forward.1} parent=0 // pred_fallthru
    _
  // Predicated region
  $region6: #{transition_block3_forward.1} parent=0 // pred_check
    _
  $region7: #{transition_block3_forward.1} parent=0 // pred_check_branch
    %11 = sbr.rel (0) target = $region9
  $region8: #{transition_block3_forward.1} parent=0 // pred_region
    _
  $region9: #{transition_block3_forward.1} parent=0 // pred_fallthru
    _
  // Predicated region
  $region10: #{transition_block3_forward.1} parent=0 // pred_check
    _
  $region11: #{transition_block3_forward.1} parent=0 // pred_check_branch
    %13 = sbr.rel (0) target = $region13
  $region12: #{transition_block3_forward.1} parent=0 // pred_region
    _
  $region13: #{transition_block3_forward.1} parent=0 // pred_fallthru
    _
  %v15 = vld [vmem:[%s1] sm:$0xff]
  %v16 = vld [vmem:[%s1 + $0x8] sm:$0xff]
  %v17 = vld [vmem:[%s1 + $0x10] sm:$0xff]
  %v18 = vld [vmem:[%s1 + $0x18] sm:$0xff]
  %v19 = vld [vmem:[%s2] sm:$0xf]
  %v20 = vld [vmem:[%s2 + $0x4] sm:$0xf]
  %v21 = vld [vmem:[%s0] sm:$0xff]
  %v22 = vld [vmem:[%s0 + $0x8] sm:$0xff]
  %v23 = vld [vmem:[%s0 + $0x10] sm:$0xff]
  %v24 = vld [vmem:[%s0 + $0x18] sm:$0xff]
  %v25 = vunpack.c.l.bf16 %v21
  %v26 = vunpack.c.h.bf16 %v21
  %v27 = vunpack.c.l.bf16 %v22
  %v28 = vunpack.c.h.bf16 %v22
  %v29 = vunpack.c.l.bf16 %v23
  %v30 = vunpack.c.h.bf16 %v23
  %v31 = vunpack.c.l.bf16 %v24
  %v32 = vunpack.c.h.bf16 %v24
  %34 = vset.pattern.permute.xlu0 0
  %35 = vperm.xlu0 %34, %v15
  %v36 = vpop.permute.xlu0 %35
  %39 = vset.pattern.permute.xlu0 0
  %40 = vperm.xlu0 %39, %v16
  %v41 = vpop.permute.xlu0 %40
  %44 = vset.pattern.permute.xlu0 0
  %45 = vperm.xlu0 %44, %v17
  %v46 = vpop.permute.xlu0 %45
  %49 = vset.pattern.permute.xlu0 0
  %50 = vperm.xlu0 %49, %v18
  %v51 = vpop.permute.xlu0 %50
  %v53 = vmul.f32 %v25, %v36
  %v54 = vmul.f32 %v26, %v36
  %v55 = vmul.f32 %v27, %v41
  %v56 = vmul.f32 %v28, %v41
  %v57 = vmul.f32 %v29, %v46
  %v58 = vmul.f32 %v30, %v46
  %v59 = vmul.f32 %v31, %v51
  %v60 = vmul.f32 %v32, %v51
  %61 = vset.pattern.permute.xlu0 1
  %62 = vperm.xlu0 %61, %v15
  %v63 = vpop.permute.xlu0 %62
  %65 = vset.pattern.permute.xlu0 1
  %66 = vperm.xlu0 %65, %v16
  %v67 = vpop.permute.xlu0 %66
  %69 = vset.pattern.permute.xlu0 1
  %70 = vperm.xlu0 %69, %v17
  %v71 = vpop.permute.xlu0 %70
  %73 = vset.pattern.permute.xlu0 1
  %74 = vperm.xlu0 %73, %v18
  %v75 = vpop.permute.xlu0 %74
  %v77 = vadd.f32 %v53, %v63
  %v78 = vadd.f32 %v54, %v63
  %v79 = vadd.f32 %v55, %v67
  %v80 = vadd.f32 %v56, %v67
  %v81 = vadd.f32 %v57, %v71
  %v82 = vadd.f32 %v58, %v71
  %v83 = vadd.f32 %v59, %v75
  %v84 = vadd.f32 %v60, %v75
  %v85 = vmax.f32 %v77, 0.0
  %v86 = vmax.f32 %v78, 0.0
  %v87 = vmax.f32 %v79, 0.0
  %v88 = vmax.f32 %v80, 0.0
  %v89 = vmax.f32 %v81, 0.0
  %v90 = vmax.f32 %v82, 0.0
  %v91 = vmax.f32 %v83, 0.0
  %v92 = vmax.f32 %v84, 0.0
  %v93 = vpack.c.bf16 %v87, %v85
  %v94 = vpack.c.bf16 %v88, %v86
  %v95 = vpack.c.bf16 %v91, %v89
  %v96 = vpack.c.bf16 %v92, %v90
  %s97 = scalar_lea.vmem %s0, 32
  %v98 = vld [vmem:[%s97] sm:$0xff]
  %v99 = vld [vmem:[%s97 + $0x8] sm:$0xff]
  %v100 = vld [vmem:[%s97 + $0x10] sm:$0xff]
  %v101 = vld [vmem:[%s97 + $0x18] sm:$0xff]
  %v102 = vunpack.c.l.bf16 %v98
  %v103 = vunpack.c.h.bf16 %v98
  %v104 = vunpack.c.l.bf16 %v99
  %v105 = vunpack.c.h.bf16 %v99
  %v106 = vunpack.c.l.bf16 %v100
  %v107 = vunpack.c.h.bf16 %v100
  %v108 = vunpack.c.l.bf16 %v101
  %v109 = vunpack.c.h.bf16 %v101
  %v110 = vmul.f32 %v102, %v36
  %v111 = vmul.f32 %v103, %v36
  %v112 = vmul.f32 %v104, %v41
  %v113 = vmul.f32 %v105, %v41
  %v114 = vmul.f32 %v106, %v46
  %v115 = vmul.f32 %v107, %v46
  %v116 = vmul.f32 %v108, %v51
  %v117 = vmul.f32 %v109, %v51
  %v118 = vadd.f32 %v110, %v63
  %v119 = vadd.f32 %v111, %v63
  %v120 = vadd.f32 %v112, %v67
  %v121 = vadd.f32 %v113, %v67
  %v122 = vadd.f32 %v114, %v71
  %v123 = vadd.f32 %v115, %v71
  %v124 = vadd.f32 %v116, %v75
  %v125 = vadd.f32 %v117, %v75
  %v126 = vmax.f32 %v118, 0.0
  %v127 = vmax.f32 %v119, 0.0
  %v128 = vmax.f32 %v120, 0.0
  %v129 = vmax.f32 %v121, 0.0
  %v130 = vmax.f32 %v122, 0.0
  %v131 = vmax.f32 %v123, 0.0
  %v132 = vmax.f32 %v124, 0.0
  %v133 = vmax.f32 %v125, 0.0
  %v134 = vpack.c.bf16 %v128, %v126
  %v135 = vpack.c.bf16 %v129, %v127
  %v136 = vpack.c.bf16 %v132, %v130
  %v137 = vpack.c.bf16 %v133, %v131
  %v140 = vunpack.c.l.b16 %v19
  %v141 = vunpack.c.l.b16 %v20
  %v142 = vpack.c.b16 %v141, %v140
  %vm143 = vcmask 261120
  %v145 = vsel %vm143, %v142, 0
  %147 = vmatprep.subr.bf16.mxu0 0
  %148 = vmatpush1.bf16.msra.mxu0 0
  %149 = vmatprep.subr.bf16.mxu0 0
  %150 = vmatpush1.bf16.msra.mxu0 0
  %151 = vmatprep.subr.bf16.mxu0 0
  %152 = vmatpush1.bf16.msra.mxu0 0
  %153 = vmatprep.subr.bf16.mxu0 0
  %154 = vmatpush1.bf16.msra.mxu0 0
  %155 = vmatprep.subr.bf16.mxu0 0
  %156 = vmatpush1.bf16.msra.mxu0 0
  %157 = vmatprep.subr.bf16.mxu0 0
  %158 = vmatpush1.bf16.msra.mxu0 0
  %159 = vmatprep.subr.bf16.mxu0 %v96
  %160 = vmatpush1.bf16.msra.mxu0 %v95
  %161 = vmatprep.subr.bf16.mxu0 %v94
  %162 = vmatpush1.bf16.msra.mxu0 %v93
  %163 = vmatprep.subr.bf16.mxu0 0
  %164 = vmatpush2.bf16.msra.mxu0 0
  %165 = vmatprep.subr.bf16.mxu0 0
  %166 = vmatpush2.bf16.msra.mxu0 0
  %167 = vmatprep.subr.bf16.mxu0 0
  %168 = vmatpush2.bf16.msra.mxu0 0
  %169 = vmatprep.subr.bf16.mxu0 0
  %170 = vmatpush2.bf16.msra.mxu0 0
  %171 = vmatprep.subr.bf16.mxu0 0
  %172 = vmatpush2.bf16.msra.mxu0 0
  %173 = vmatprep.subr.bf16.mxu0 0
  %174 = vmatpush2.bf16.msra.mxu0 0
  %175 = vmatprep.subr.bf16.mxu0 0
  %176 = vmatpush2.bf16.msra.mxu0 0
  %177 = vmatprep.subr.bf16.mxu0 0
  %178 = vmatpush2.bf16.msra.mxu0 0
  %179 = vmatprep.mubr.bf16.mxu0 0
  %180 = vmatmul.mubr.bf16.gmra.mxu0 %v145
  %v181 = vpop.f32.mrf.mxu0
  %v182 = vadd.f32 0.0, %v181
  %v183 = vpop.f32.mrf.mxu0
  %v184 = vadd.f32 0.0, %v183
  %v185 = vpop.f32.mrf.mxu0
  %v186 = vadd.f32 0.0, %v185
  %v187 = vpop.f32.mrf.mxu0
  %v188 = vadd.f32 0.0, %v187
  %189 = vdwg.mxu0
  %190 = vmatprep.subr.bf16.mxu0 0
  %191 = vmatpush1.bf16.msra.mxu0 0
  %192 = vmatprep.subr.bf16.mxu0 0
  %193 = vmatpush1.bf16.msra.mxu0 0
  %194 = vmatprep.subr.bf16.mxu0 0
  %195 = vmatpush1.bf16.msra.mxu0 0
  %196 = vmatprep.subr.bf16.mxu0 0
  %197 = vmatpush1.bf16.msra.mxu0 0
  %198 = vmatprep.subr.bf16.mxu0 0
  %199 = vmatpush1.bf16.msra.mxu0 0
  %200 = vmatprep.subr.bf16.mxu0 0
  %201 = vmatpush1.bf16.msra.mxu0 0
  %202 = vmatprep.subr.bf16.mxu0 %v137
  %203 = vmatpush1.bf16.msra.mxu0 %v136
  %204 = vmatprep.subr.bf16.mxu0 %v135
  %205 = vmatpush1.bf16.msra.mxu0 %v134
  %206 = vmatprep.subr.bf16.mxu0 0
  %207 = vmatpush2.bf16.msra.mxu0 0
  %208 = vmatprep.subr.bf16.mxu0 0
  %209 = vmatpush2.bf16.msra.mxu0 0
  %210 = vmatprep.subr.bf16.mxu0 0
  %211 = vmatpush2.bf16.msra.mxu0 0
  %212 = vmatprep.subr.bf16.mxu0 0
  %213 = vmatpush2.bf16.msra.mxu0 0
  %214 = vmatprep.subr.bf16.mxu0 0
  %215 = vmatpush2.bf16.msra.mxu0 0
  %216 = vmatprep.subr.bf16.mxu0 0
  %217 = vmatpush2.bf16.msra.mxu0 0
  %218 = vmatprep.subr.bf16.mxu0 0
  %219 = vmatpush2.bf16.msra.mxu0 0
  %220 = vmatprep.subr.bf16.mxu0 0
  %221 = vmatpush2.bf16.msra.mxu0 0
  %222 = vmatprep.mubr.bf16.mxu0 0
  %223 = vmatmul.mubr.bf16.gmra.mxu0 %v145
  %v224 = vpop.f32.mrf.mxu0
  %v225 = vadd.f32 0.0, %v224
  %v226 = vpop.f32.mrf.mxu0
  %v227 = vadd.f32 0.0, %v226
  %v228 = vpop.f32.mrf.mxu0
  %v229 = vadd.f32 0.0, %v228
  %v230 = vpop.f32.mrf.mxu0
  %v231 = vadd.f32 0.0, %v230
  %232 = vdwg.mxu0
  %v233 = vpack.c.bf16 %v186, %v182
  %v234 = vpack.c.bf16 %v188, %v184
  %v237 = vunpack.c.l.b16 %v233
  %v238 = vunpack.c.l.b16 %v234
  %v239 = vunpack.c.h.b16 %v233
  %v240 = vunpack.c.h.b16 %v234
  %v241 = vpack.c.b16 %v238, %v237
  %v242 = vpack.c.b16 %v240, %v239
  %245 = vst [vmem:[%s3] sm:$0xff] %v241
  %246 = vst [vmem:[%s3 + $0x8] sm:$0xff] %v242
  %v247 = vpack.c.bf16 %v229, %v225
  %v248 = vpack.c.bf16 %v231, %v227
  %v251 = vunpack.c.l.b16 %v247
  %v252 = vunpack.c.l.b16 %v248
  %v253 = vunpack.c.h.b16 %v247
  %v254 = vunpack.c.h.b16 %v248
  %v255 = vpack.c.b16 %v252, %v251
  %v256 = vpack.c.b16 %v254, %v253
  %s259 = scalar_lea.vmem %s3, 16
  %260 = vst [vmem:[%s259] sm:$0xff] %v255
  %261 = vst [vmem:[%s259 + $0x8] sm:$0xff] %v256
  // Predicated region
  $region14: #{transition_block3_forward.1} parent=0 // pred_check
    _
  $region15: #{transition_block3_forward.1} parent=0 // pred_check_branch
    %263 = sbr.rel (0) target = $region17
  $region16: #{transition_block3_forward.1} parent=0 // pred_region
    _
  $region17: #{transition_block3_forward.1} parent=0 // pred_fallthru
    _
  // Predicated region
  $region18: #{transition_block3_forward.1} parent=0 // pred_check
    _
  $region19: #{transition_block3_forward.1} parent=0 // pred_check_branch
    %265 = sbr.rel (0) target = $region21
  $region20: #{transition_block3_forward.1} parent=0 // pred_region
    _
  $region21: #{transition_block3_forward.1} parent=0 // pred_fallthru
    _

</llo_original>
